<compile_context>
chip_gen: v6e
topology: v6e:2x2x1
jax: 0.10.0
libtpu: 0.0.40
codegen_flags: <defaults>
</compile_context>

<pallas_src>
import functools

import jax
import jax.numpy as jnp
from jax.experimental import pallas as pl
from jax.experimental.pallas import tpu as pltpu

_NEG = -1e30  # value for out-of-range classes (finite so no NaNs feed exp/max)


def _round_up(x, n):
    return ((x + n - 1) // n) * n


def _cdiv(a, b):
    return (a + b - 1) // b


def _cosface_kernel(x_ref, labels_ref, lab_logit_ref, out_ref, m_sc, l_sc,
                    *, s, m, block_c, num_classes):
    """One (TB, TC) tile of the online-LSE CosFace cross entropy.

    x_ref:         (TB, TC) logits tile (native dtype, upcast to f32 here)
    labels_ref:    (TB, 1)  int32 class indices for this B-tile
    lab_logit_ref: (TB, 1)  f32 logit at each row's label (wrapper-side gather)
    out_ref:       (TB, 1)  f32 per-row loss (written on the last C-tile)
    m_sc / l_sc:   (TB, 1)  f32 scratch -- running max / running sum-of-exp.
    """
    c = pl.program_id(1)

    @pl.when(c == 0)
    def _():
        m_sc[...] = jnp.full_like(m_sc, -jnp.inf)
        l_sc[...] = jnp.zeros_like(l_sc)

    x = x_ref[...].astype(jnp.float32)          # (TB, TC)
    tb, tc = x.shape

    # Local column ids (hoistable constant); fold the tile offset into the
    # per-row label instead of the iota.
    col = jax.lax.broadcasted_iota(jnp.int32, (tb, tc), 1)
    lab_local = labels_ref[...] - c * block_c   # (TB, 1)
    mask = col == lab_local                     # (TB, TC), true at the label col

    # Streamed adj = x*s with the margin applied at the label column (single
    # fused select).  Keeping the margin in the streamed path keeps the LSE
    # exact (no finalize-time cancellation).
    xs = x * jnp.float32(s)
    adj = jnp.where(mask, xs - jnp.float32(s * m), xs)

    # Tail mask along C (static no-op when C divides the tile): out-of-range
    # columns are undefined memory, so clamp them BEFORE the max/exp.
    if num_classes % block_c != 0:
        lim = num_classes - c * block_c
        adj = jnp.where(col < lim, adj, jnp.float32(_NEG))

    # Online (running) logsumexp across C-tiles.
    tile_max = jnp.max(adj, axis=-1, keepdims=True)           # (TB, 1)
    m_new = jnp.maximum(m_sc[...], tile_max)
    alpha = jnp.exp(m_sc[...] - m_new)
    p = jnp.exp(adj - m_new)
    l_sc[...] = alpha * l_sc[...] + jnp.sum(p, axis=-1, keepdims=True)
    m_sc[...] = m_new

    @pl.when(c == pl.num_programs(1) - 1)
    def _():
        lse = m_sc[...] + jnp.log(l_sc[...])
        lab_adj = lab_logit_ref[...] * jnp.float32(s) - jnp.float32(s * m)
        out_ref[...] = (lse - lab_adj).astype(out_ref.dtype)


def cosface_loss(logits, labels, *, s=32.0, m=0.5, block_b=256, block_c=None):
    """logits: (B, C) float (f32 or bf16), labels: (B,) int. Returns scalar f32 loss."""
    B, C = logits.shape
    itemsize = jnp.dtype(logits.dtype).itemsize

    # Default C-tile: ~2 MiB per DMA buffer in the native dtype.
    if block_c is None:
        block_c = 4096 if itemsize <= 2 else 2048

    # Lane/sublane aligned tiles, clamped to the problem size.
    tb = min(block_b, _round_up(B, 8))
    # v7x megacore: guarantee >= 2 B-tiles when there are enough rows so the
    # "parallel" axis actually shards across both TensorCores.
    if _round_up(B, 8) >= 16:
        tb = min(tb, _round_up(_cdiv(B, 2), 8))
    tc = min(block_c, _round_up(C, 128))

    nb = _cdiv(B, tb)
    nc = _cdiv(C, tc)
    Bp = nb * tb

    # Tiny per-row side inputs: labels and the gathered label logit (B elements
    # each; padded to the tile grid so their reads are always in-bounds).
    lab = labels.astype(jnp.int32).reshape(B, 1)
    lab_logit = jnp.take_along_axis(logits, lab, axis=1).astype(jnp.float32)
    if Bp != B:
        lab = jnp.pad(lab, ((0, Bp - B), (0, 0)))
        lab_logit = jnp.pad(lab_logit, ((0, Bp - B), (0, 0)))

    kernel = functools.partial(_cosface_kernel, s=float(s), m=float(m),
                               block_c=tc, num_classes=C)

    # Only raise the scoped-VMEM limit if the (double-buffered) logits tiles
    # need it; default tiles (2 MiB/buffer) fit every generation's default.
    compiler_kwargs = {}
    logits_buf_bytes = 2 * tb * tc * itemsize
    if logits_buf_bytes > 12 * (1 << 20):
        compiler_kwargs["vmem_limit_bytes"] = min(
            2 * logits_buf_bytes + (4 << 20), 64 << 20)

    cost = pl.CostEstimate(
        flops=6 * B * C,
        transcendentals=B * C,            # one exp per element
        bytes_accessed=B * C * itemsize + 16 * B,
    )

    per_row = pl.pallas_call(
        kernel,
        out_shape=jax.ShapeDtypeStruct((B, 1), jnp.float32),
        grid_spec=pltpu.PrefetchScalarGridSpec(
            num_scalar_prefetch=0,
            grid=(nb, nc),
            in_specs=[
                pl.BlockSpec((tb, tc), lambda b, c: (b, c)),   # logits tile
                pl.BlockSpec((tb, 1), lambda b, c: (b, 0)),    # labels (resident over C)
                pl.BlockSpec((tb, 1), lambda b, c: (b, 0)),    # label logit (resident over C)
            ],
            out_specs=pl.BlockSpec((tb, 1), lambda b, c: (b, 0)),  # per-row loss
            scratch_shapes=[
                pltpu.VMEM((tb, 1), jnp.float32),  # running max
                pltpu.VMEM((tb, 1), jnp.float32),  # running sum of exp
            ],
        ),
        compiler_params=pltpu.CompilerParams(
            dimension_semantics=("parallel", "arbitrary"),
            **compiler_kwargs,
        ),
        cost_estimate=cost,
    )(logits, lab, lab_logit)

    # Mean over the B real rows (partial last B-tile writes beyond B are
    # masked by Pallas, and out_shape is exactly (B, 1)).
    return jnp.mean(per_row[:, 0])


def _reference(logits, labels, s=32.0, m=0.5):
    one_hot = jax.nn.one_hot(labels, logits.shape[1], dtype=jnp.float32)
    adj = (logits.astype(jnp.float32) - one_hot * m) * s
    logp = jax.nn.log_softmax(adj, axis=-1)
    return -jnp.mean(jnp.take_along_axis(logp, labels[:, None], axis=1))


if __name__ == "__main__":
    key = jax.random.PRNGKey(0)
    k1, k2, k3, k4 = jax.random.split(key, 4)

    # Small shapes: 16 samples, 300 identities (C not a tile multiple).
    B, C = 16, 300
    logits = jax.random.normal(k1, (B, C), dtype=jnp.float32)
    labels = jax.random.randint(k2, (B,), 0, C, dtype=jnp.int32)
    ref = _reference(logits, labels, s=32.0, m=0.5)

    # Multi-tile grid (2 B-tiles x 3 C-tiles, last C-tile partial): exercises
    # the online-LSE accumulation, folded label offset, and C-tail masking.
    loss_tiled = cosface_loss(logits, labels, s=32.0, m=0.5, block_b=8, block_c=128)
    loss_tiled = jax.block_until_ready(loss_tiled)
    assert jnp.allclose(loss_tiled, ref, rtol=1e-5, atol=1e-3), (loss_tiled, ref)

    # Default (large-tile) configuration.
    loss_default = cosface_loss(logits, labels, s=32.0, m=0.5)
    loss_default = jax.block_until_ready(loss_default)
    assert jnp.allclose(loss_default, ref, rtol=1e-5, atol=1e-3), (loss_default, ref)

    # bf16 logits: native-dtype DMA, in-kernel upcast.
    logits_bf16 = logits.astype(jnp.bfloat16)
    ref_bf16 = _reference(logits_bf16, labels, s=32.0, m=0.5)
    loss_bf16 = cosface_loss(logits_bf16, labels, s=32.0, m=0.5)
    loss_bf16 = jax.block_until_ready(loss_bf16)
    assert jnp.allclose(loss_bf16, ref_bf16, rtol=1e-4, atol=5e-3), (loss_bf16, ref_bf16)

    # Ragged batch (B=13): exercises the partial last B-tile / masked writes.
    B2 = 13
    logits2 = jax.random.normal(k3, (B2, C), dtype=jnp.float32)
    labels2 = jax.random.randint(k4, (B2,), 0, C, dtype=jnp.int32)
    ref2 = _reference(logits2, labels2, s=32.0, m=0.5)
    loss2 = cosface_loss(logits2, labels2, s=32.0, m=0.5)
    loss2 = jax.block_until_ready(loss2)
    assert jnp.allclose(loss2, ref2, rtol=1e-5, atol=1e-3), (loss2, ref2)

    # TODO(synk): PyTorch F.cross_entropy's ignore_index=-100 semantics are not
    # handled (the original module never uses it).

    print("KERNEL_OK")
</pallas_src>

<mosaic_0001>
module attributes {stable_mosaic.version = 11 : i64} {
  func.func @_cosface_kernel(%arg0: i32, %arg1: i32, %arg2: memref<8x128xf32, #tpu.memory_space<vmem>>, %arg3: memref<8x1xi32, #tpu.memory_space<vmem>>, %arg4: memref<8x1xf32, #tpu.memory_space<vmem>>, %arg5: memref<8x1xf32, #tpu.memory_space<vmem>>, %arg6: memref<8x1xf32, #tpu.memory_space<vmem>>, %arg7: memref<8x1xf32, #tpu.memory_space<vmem>>) attributes {dimension_semantics = [#tpu.dimension_semantics<parallel>, #tpu.dimension_semantics<arbitrary>], iteration_bounds = array<i64: 2, 3>, scalar_prefetch = 0 : i64, scratch_operands = 2 : i64, tpu.core_type = #tpu.core_type<tc>, window_params = [{transform_indices = @transform_0, window_bounds = array<i64: 8, 128>}, {transform_indices = @transform_1, window_bounds = array<i64: 8, 1>}, {transform_indices = @transform_2, window_bounds = array<i64: 8, 1>}, {transform_indices = @transform_3, window_bounds = array<i64: 8, 1>}]} {
    %c0_i32 = arith.constant 0 : i32
    %0 = arith.cmpi eq, %arg1, %c0_i32 : i32
    %1 = arith.extui %0 : i1 to i32
    %c0_i32_0 = arith.constant 0 : i32
    %2 = arith.cmpi ne, %1, %c0_i32_0 : i32
    scf.if %2 {
      %cst_20 = arith.constant 0xFF800000 : f32
      %42 = vector.broadcast %cst_20 : f32 to vector<8x1xf32>
      %c0_21 = arith.constant 0 : index
      %c0_22 = arith.constant 0 : index
      %43 = vector.load %arg6[%c0_21, %c0_22] : memref<8x1xf32, #tpu.memory_space<vmem>>, vector<8x1xf32>
      tpu.vector_store %arg6[%c0_21, %c0_22], %42 {strides = array<i32>} : memref<8x1xf32, #tpu.memory_space<vmem>>, vector<8x1xf32>,
      %cst_23 = arith.constant 0.000000e+00 : f32
      %44 = vector.broadcast %cst_23 : f32 to vector<8x1xf32>
      %c0_24 = arith.constant 0 : index
      %c0_25 = arith.constant 0 : index
      %45 = vector.load %arg7[%c0_24, %c0_25] : memref<8x1xf32, #tpu.memory_space<vmem>>, vector<8x1xf32>
      tpu.vector_store %arg7[%c0_24, %c0_25], %44 {strides = array<i32>} : memref<8x1xf32, #tpu.memory_space<vmem>>, vector<8x1xf32>,
    } else {
    }
    %c0 = arith.constant 0 : index
    %c0_1 = arith.constant 0 : index
    %3 = vector.load %arg2[%c0, %c0_1] : memref<8x128xf32, #tpu.memory_space<vmem>>, vector<8x128xf32>
    %4 = tpu.iota {dimensions = array<i32: 1>} : vector<8x128xi32>
    %c0_2 = arith.constant 0 : index
    %c0_3 = arith.constant 0 : index
    %5 = vector.load %arg3[%c0_2, %c0_3] : memref<8x1xi32, #tpu.memory_space<vmem>>, vector<8x1xi32>
    %c128_i32 = arith.constant 128 : i32
    %6 = arith.muli %arg1, %c128_i32 : i32
    %7 = vector.broadcast %6 : i32 to vector<8x1xi32>
    %8 = arith.subi %5, %7 : vector<8x1xi32>
    %9 = vector.broadcast %8 : vector<8x1xi32> to vector<8x128xi32>
    %10 = arith.cmpi eq, %4, %9 : vector<8x128xi32>
    %cst = arith.constant 3.200000e+01 : f32
    %11 = vector.broadcast %cst : f32 to vector<8x128xf32>
    %12 = arith.mulf %3, %11 : vector<8x128xf32>
    %cst_4 = arith.constant 1.600000e+01 : f32
    %13 = vector.broadcast %cst_4 : f32 to vector<8x128xf32>
    %14 = arith.subf %12, %13 : vector<8x128xf32>
    %15 = arith.select %10, %14, %12 : vector<8x128xi1>, vector<8x128xf32>
    %c128_i32_5 = arith.constant 128 : i32
    %16 = arith.muli %arg1, %c128_i32_5 : i32
    %c300_i32 = arith.constant 300 : i32
    %17 = arith.subi %c300_i32, %16 : i32
    %18 = vector.broadcast %17 : i32 to vector<8x128xi32>
    %19 = arith.cmpi slt, %4, %18 : vector<8x128xi32>
    %cst_6 = arith.constant -1.000000e+30 : f32
    %20 = vector.broadcast %cst_6 : f32 to vector<8x128xf32>
    %21 = arith.select %19, %15, %20 : vector<8x128xi1>, vector<8x128xf32>
    %cst_7 = arith.constant dense<0xFF800000> : vector<8xf32>
    %22 = vector.multi_reduction <maximumf>, %21, %cst_7 [1] : vector<8x128xf32> to vector<8xf32>
    %23 = vector.shape_cast %22 : vector<8xf32> to vector<8x1xf32>
    %c0_8 = arith.constant 0 : index
    %c0_9 = arith.constant 0 : index
    %24 = vector.load %arg6[%c0_8, %c0_9] : memref<8x1xf32, #tpu.memory_space<vmem>>, vector<8x1xf32>
    %25 = arith.maximumf %24, %23 : vector<8x1xf32>
    %c0_10 = arith.constant 0 : index
    %c0_11 = arith.constant 0 : index
    %26 = vector.load %arg6[%c0_10, %c0_11] : memref<8x1xf32, #tpu.memory_space<vmem>>, vector<8x1xf32>
    %27 = arith.subf %26, %25 : vector<8x1xf32>
    %28 = math.exp %27 : vector<8x1xf32>
    %29 = vector.broadcast %25 : vector<8x1xf32> to vector<8x128xf32>
    %30 = arith.subf %21, %29 : vector<8x128xf32>
    %31 = math.exp %30 : vector<8x128xf32>
    %c0_12 = arith.constant 0 : index
    %c0_13 = arith.constant 0 : index
    %32 = vector.load %arg7[%c0_12, %c0_13] : memref<8x1xf32, #tpu.memory_space<vmem>>, vector<8x1xf32>
    %33 = arith.mulf %28, %32 : vector<8x1xf32>
    %cst_14 = arith.constant dense<0.000000e+00> : vector<8xf32>
    %34 = vector.multi_reduction <add>, %31, %cst_14 [1] : vector<8x128xf32> to vector<8xf32>
    %35 = vector.shape_cast %34 : vector<8xf32> to vector<8x1xf32>
    %36 = arith.addf %33, %35 : vector<8x1xf32>
    %c0_15 = arith.constant 0 : index
    %c0_16 = arith.constant 0 : index
    %37 = vector.load %arg7[%c0_15, %c0_16] : memref<8x1xf32, #tpu.memory_space<vmem>>, vector<8x1xf32>
    tpu.vector_store %arg7[%c0_15, %c0_16], %36 {strides = array<i32>} : memref<8x1xf32, #tpu.memory_space<vmem>>, vector<8x1xf32>,
    %c0_17 = arith.constant 0 : index
    %c0_18 = arith.constant 0 : index
    %38 = vector.load %arg6[%c0_17, %c0_18] : memref<8x1xf32, #tpu.memory_space<vmem>>, vector<8x1xf32>
    tpu.vector_store %arg6[%c0_17, %c0_18], %25 {strides = array<i32>} : memref<8x1xf32, #tpu.memory_space<vmem>>, vector<8x1xf32>,
    %c2_i32 = arith.constant 2 : i32
    %39 = arith.cmpi eq, %arg1, %c2_i32 : i32
    %40 = arith.extui %39 : i1 to i32
    %c0_i32_19 = arith.constant 0 : i32
    %41 = arith.cmpi ne, %40, %c0_i32_19 : i32
    scf.if %41 {
      %c0_20 = arith.constant 0 : index
      %c0_21 = arith.constant 0 : index
      %42 = vector.load %arg6[%c0_20, %c0_21] : memref<8x1xf32, #tpu.memory_space<vmem>>, vector<8x1xf32>
      %c0_22 = arith.constant 0 : index
      %c0_23 = arith.constant 0 : index
      %43 = vector.load %arg7[%c0_22, %c0_23] : memref<8x1xf32, #tpu.memory_space<vmem>>, vector<8x1xf32>
      %44 = math.log %43 : vector<8x1xf32>
      %45 = arith.addf %42, %44 : vector<8x1xf32>
      %c0_24 = arith.constant 0 : index
      %c0_25 = arith.constant 0 : index
      %46 = vector.load %arg4[%c0_24, %c0_25] : memref<8x1xf32, #tpu.memory_space<vmem>>, vector<8x1xf32>
      %cst_26 = arith.constant 3.200000e+01 : f32
      %47 = vector.broadcast %cst_26 : f32 to vector<8x1xf32>
      %48 = arith.mulf %46, %47 : vector<8x1xf32>
      %cst_27 = arith.constant 1.600000e+01 : f32
      %49 = vector.broadcast %cst_27 : f32 to vector<8x1xf32>
      %50 = arith.subf %48, %49 : vector<8x1xf32>
      %51 = arith.subf %45, %50 : vector<8x1xf32>
      %c0_28 = arith.constant 0 : index
      %c0_29 = arith.constant 0 : index
      %52 = vector.load %arg5[%c0_28, %c0_29] : memref<8x1xf32, #tpu.memory_space<vmem>>, vector<8x1xf32>
      tpu.vector_store %arg5[%c0_28, %c0_29], %51 {strides = array<i32>} : memref<8x1xf32, #tpu.memory_space<vmem>>, vector<8x1xf32>,
    } else {
    }
    return
  }
  func.func @transform_0(%arg0: i32, %arg1: i32) -> (i32, i32) {
    %c0_i32 = arith.constant 0 : i32
    return %arg0, %arg1 : i32, i32
  }
  func.func @transform_1(%arg0: i32, %arg1: i32) -> (i32, i32) {
    %c0_i32 = arith.constant 0 : i32
    %c0_i32_0 = arith.constant 0 : i32
    return %arg0, %c0_i32 : i32, i32
  }
  func.func @transform_2(%arg0: i32, %arg1: i32) -> (i32, i32) {
    %c0_i32 = arith.constant 0 : i32
    %c0_i32_0 = arith.constant 0 : i32
    return %arg0, %c0_i32 : i32, i32
  }
  func.func @transform_3(%arg0: i32, %arg1: i32) -> (i32, i32) {
    %c0_i32 = arith.constant 0 : i32
    %c0_i32_0 = arith.constant 0 : i32
    return %arg0, %c0_i32 : i32, i32
  }
}

</mosaic_0001>

<llo_original>
// kernel: tpu_custom_call.1
$region0: #{tpu_custom_call.1}
  #allocation0 [shape = 'u32[]', space=smem, size = 0x4, offset = 0x4, fixed_abs, tag = 'smem constant byte address 0x4 - core index']
  #allocation1 [shape = 'u32[144,128]{1,0:T(1,128)}', space=vmem, size = 0x12000, scoped, tag = 'internal scratch']
  #allocation2 [shape = 'f32[8,1]{1,0:T(8,128)}', space=vmem, size = 0x1000, scoped, tag = 'scratch operand']
  #allocation3 [shape = 'f32[8,1]{1,0:T(8,128)}', space=vmem, size = 0x1000, scoped, tag = 'scratch operand']
  %s0 = inlined_call_operand.hbm [shape: f32[16,300], index: 0, kind: input, shape index: {}]
  %s1 = inlined_call_operand.vmem [shape: s32[16,1], index: 1, kind: input, shape index: {}]
  %s2 = inlined_call_operand.vmem [shape: f32[16,1], index: 2, kind: input, shape index: {}]
  %s3 = inlined_call_operand.vmem [shape: f32[16,1], index: 3, kind: output, shape index: {}]
  %s4 = sld [smem:[#allocation0]]
  $region57: #{tpu_custom_call.1} parent=0
    _
  %s6 = ssub.s32 1, %s4
  %s7 = scalar_select 0, %s6, %s4
  $region1: #{tpu_custom_call.1} parent=0
    #allocation4 [shape = 'u8[8192]{0}', space=vmem, size = 0x2000, scoped, tag = 'input window, operand 0']
    #allocation5 [shape = 's32[2]{0}', space=sflag, size = 0x8, scoped, tag = 'scoped memory for tpu_custom_call.1']
    %8 = vsyncpa [#allocation5], 0
    %s9 = scalar_lea.sflag [#allocation5], 1
    %10 = vsyncpa %s9, 0
    loop: start=0, step=1, limit=8
    $region2: #{tpu_custom_call.1} parent=1 // loop_pre_header
      _
    $region3: #{tpu_custom_call.1} parent=1 // loop_header
      %s12 = sphi 0, %s16
      %p13 = scmp.ge.s32.totalorder %s12, 8
      %s19 = sphi 0, %s31
      %s20 = sphi 0, %s27
      %s21 = sphi 0, %s19
      %s22 = sphi 0, %s20
      %s23 = sphi 0, %s21
      %s24 = sphi 0, %s22
      %s36 = sphi 0, %s38
      %s39 = sphi 0, %s36
      %s40 = sphi 0, %s39
      %s56 = sphi 0, %s40
      %s62 = sphi 0, %s64
      %s65 = sphi 0, %s62
      %s66 = sphi 0, %s65
      %s82 = sphi 0, %s66
      %s88 = sphi 0, %s90
      %s91 = sphi 0, %s88
      %s92 = sphi 0, %s91
      %s108 = sphi 0, %s92
      %s114 = sphi 0, %s116
      %s117 = sphi 0, %s114
      %s118 = sphi 0, %s117
      %s134 = sphi 0, %s118
    $region4: #{tpu_custom_call.1} parent=1 // loop_header_branch
      %15 = sbr.rel (%p13) target = $region8
    $region5: #{tpu_custom_call.1} parent=1 // loop_body
      %s17 = ssub.s32 %s12, 1
      %s18 = ssub.s32 %s12, 2
      %s25 = sadd.s32 1, %s20
      %p26 = scmp.ge.s32.totalorder %s25, 3
      %s27 = scalar_select %p26, 0, %s25
      %s28 = sadd.s32 1, %s19
      %s29 = scalar_select %p26, %s28, %s19
      %p30 = scmp.ge.s32.totalorder %s29, 2
      %s31 = scalar_select %p30, 0, %s29
      %s32 = ssub.s32 %s19, %s31
      %s33 = ssub.s32 %s20, %s27
      %s34 = sor.u32 %s32, %s33
      %p35 = scmp.eq.s32.totalorder %s34, 0
      %s37 = sadd.s32 %s36, 1
      %s38 = scalar_select %p35, %s36, %s37
      %p41 = pneg %p35
      %p42 = scmp.eq.s32.totalorder %s12, 5
      %p43 = por %p41, %p42
      %p44 = scmp.ne.s32.totalorder %s36, %s39
      %p45 = scmp.eq.s32.totalorder %s12, 0
      %p46 = por %p44, %p45
      %p47 = scmp.ne.s32.totalorder %s36, %s39
      %p48 = scmp.eq.s32.totalorder %s17, 5
      %p49 = por %p47, %p48
      %p50 = scmp.ne.s32.totalorder %s39, %s40
      %p51 = scmp.eq.s32.totalorder %s17, 0
      %p52 = por %p50, %p51
      %p53 = scmp.ne.s32.totalorder %s39, %s40
      %p54 = scmp.eq.s32.totalorder %s18, 5
      %p55 = por %p53, %p54
      %p57 = scmp.ne.s32.totalorder %s40, %s56
      %p58 = scmp.eq.s32.totalorder %s18, 0
      %p59 = por %p57, %p58
      %s60 = ssub.s32 %s19, %s31
      %p61 = scmp.eq.s32.totalorder %s60, 0
      %s63 = sadd.s32 %s62, 1
      %s64 = scalar_select %p61, %s62, %s63
      %p67 = pneg %p61
      %p68 = scmp.eq.s32.totalorder %s12, 5
      %p69 = por %p67, %p68
      %p70 = scmp.ne.s32.totalorder %s62, %s65
      %p71 = scmp.eq.s32.totalorder %s12, 0
      %p72 = por %p70, %p71
      %p73 = scmp.ne.s32.totalorder %s62, %s65
      %p74 = scmp.eq.s32.totalorder %s17, 5
      %p75 = por %p73, %p74
      %p76 = scmp.ne.s32.totalorder %s65, %s66
      %p77 = scmp.eq.s32.totalorder %s17, 0
      %p78 = por %p76, %p77
      %p79 = scmp.ne.s32.totalorder %s65, %s66
      %p80 = scmp.eq.s32.totalorder %s18, 5
      %p81 = por %p79, %p80
      %p83 = scmp.ne.s32.totalorder %s66, %s82
      %p84 = scmp.eq.s32.totalorder %s18, 0
      %p85 = por %p83, %p84
      %s86 = ssub.s32 %s19, %s31
      %p87 = scmp.eq.s32.totalorder %s86, 0
      %s89 = sadd.s32 %s88, 1
      %s90 = scalar_select %p87, %s88, %s89
      %p93 = pneg %p87
      %p94 = scmp.eq.s32.totalorder %s12, 5
      %p95 = por %p93, %p94
      %p96 = scmp.ne.s32.totalorder %s88, %s91
      %p97 = scmp.eq.s32.totalorder %s12, 0
      %p98 = por %p96, %p97
      %p99 = scmp.ne.s32.totalorder %s88, %s91
      %p100 = scmp.eq.s32.totalorder %s17, 5
      %p101 = por %p99, %p100
      %p102 = scmp.ne.s32.totalorder %s91, %s92
      %p103 = scmp.eq.s32.totalorder %s17, 0
      %p104 = por %p102, %p103
      %p105 = scmp.ne.s32.totalorder %s91, %s92
      %p106 = scmp.eq.s32.totalorder %s18, 5
      %p107 = por %p105, %p106
      %p109 = scmp.ne.s32.totalorder %s92, %s108
      %p110 = scmp.eq.s32.totalorder %s18, 0
      %p111 = por %p109, %p110
      %s112 = ssub.s32 %s19, %s31
      %p113 = scmp.eq.s32.totalorder %s112, 0
      %s115 = sadd.s32 %s114, 1
      %s116 = scalar_select %p113, %s114, %s115
      %p119 = pneg %p113
      %p120 = scmp.eq.s32.totalorder %s12, 5
      %p121 = por %p119, %p120
      %p122 = scmp.ne.s32.totalorder %s114, %s117
      %p123 = scmp.eq.s32.totalorder %s12, 0
      %p124 = por %p122, %p123
      %p125 = scmp.ne.s32.totalorder %s114, %s117
      %p126 = scmp.eq.s32.totalorder %s17, 5
      %p127 = por %p125, %p126
      %p128 = scmp.ne.s32.totalorder %s117, %s118
      %p129 = scmp.eq.s32.totalorder %s17, 0
      %p130 = por %p128, %p129
      %p131 = scmp.ne.s32.totalorder %s117, %s118
      %p132 = scmp.eq.s32.totalorder %s18, 5
      %p133 = por %p131, %p132
      %p135 = scmp.ne.s32.totalorder %s118, %s134
      %p136 = scmp.eq.s32.totalorder %s18, 0
      %p137 = por %p135, %p136
      %p138 = scmp.le.s32.totalorder 1, %s12
      %p139 = scmp.lt.s32.totalorder %s12, 7
      %p140 = pnand %p138, %p139
      %p141 = pneg %p140
      // Predicated region
      $region9: #{tpu_custom_call.1} parent=5 // pred_check
        _
      $region10: #{tpu_custom_call.1} parent=5 // pred_check_branch
        %143 = sbr.rel (%p140) target = $region12
      $region11: #{tpu_custom_call.1} parent=5 // pred_region
        %s144 = ssub.s32 %s12, 1
      $region12: #{tpu_custom_call.1} parent=5 // pred_fallthru
        _
      %p145 = scmp.lt.s32.totalorder %s12, 6
      // Predicated region
      $region13: #{tpu_custom_call.1} parent=5 // pred_check
        %p146 = pneg %p145
      $region14: #{tpu_custom_call.1} parent=5 // pred_check_branch
        %148 = sbr.rel (%p146) target = $region16
      $region15: #{tpu_custom_call.1} parent=5 // pred_region
        // Predicated region
        $region17: #{tpu_custom_call.1} parent=15 // pred_check
          %p149 = pneg %p46
        $region18: #{tpu_custom_call.1} parent=15 // pred_check_branch
          %151 = sbr.rel (%p149) target = $region20
        $region19: #{tpu_custom_call.1} parent=15 // pred_region
          %s152 = sand.u32 %s36, 1
          %s153 = scalar_lea.sflag [#allocation5], %s152
          %s154 = sand.u32 %s36, 1
          %s155 = smul.addr %s154, 8
          %s156 = scalar_lea.vmem [#allocation4], %s155
          %s158 = ssub.s32 128, 128
          %159 = vsyncadd %s153, %s158
          %s160 = smul.addr %s19, 3
          %s161 = sadd.s32 %s20, %s160
          %s162 = smul.addr %s161, 128
          %s163 = scalar_lea.hbm %s0, %s162
          %s165 = sshll.u32 %s156, 4
          %s166 = int_to_ptr.vmem [resolvable:$true] %s165
          %168 = dma.hbm_to_vmem [thread:$0]  %s163, 128, %s166, %s153
        $region20: #{tpu_custom_call.1} parent=15 // pred_fallthru
          _
        // Predicated region
        $region21: #{tpu_custom_call.1} parent=15 // pred_check
          %p169 = pneg %p72
        $region22: #{tpu_custom_call.1} parent=15 // pred_check_branch
          %171 = sbr.rel (%p169) target = $region24
        $region23: #{tpu_custom_call.1} parent=15 // pred_region
          %p172 = scmp.lt.s32.totalorder %s19, 1
          %s173 = scalar_select %p172, %s19, 1
          %s174 = smul.addr %s173, 8
          %s175 = scalar_lea.vmem %s1, %s174
        $region24: #{tpu_custom_call.1} parent=15 // pred_fallthru
          _
        // Predicated region
        $region25: #{tpu_custom_call.1} parent=15 // pred_check
          %p176 = pneg %p98
        $region26: #{tpu_custom_call.1} parent=15 // pred_check_branch
          %178 = sbr.rel (%p176) target = $region28
        $region27: #{tpu_custom_call.1} parent=15 // pred_region
          %p179 = scmp.lt.s32.totalorder %s19, 1
          %s180 = scalar_select %p179, %s19, 1
          %s181 = smul.addr %s180, 8
          %s182 = scalar_lea.vmem %s2, %s181
        $region28: #{tpu_custom_call.1} parent=15 // pred_fallthru
          _
      $region16: #{tpu_custom_call.1} parent=5 // pred_fallthru
        _
      %p183 = scmp.le.s32.totalorder 1, %s12
      %p184 = scmp.lt.s32.totalorder %s12, 7
      %p185 = pnand %p183, %p184
      %p186 = pneg %p185
      // Predicated region
      $region29: #{tpu_custom_call.1} parent=5 // pred_check
        _
      $region30: #{tpu_custom_call.1} parent=5 // pred_check_branch
        %188 = sbr.rel (%p185) target = $region32
      $region31: #{tpu_custom_call.1} parent=5 // pred_region
        %s189 = ssub.s32 %s12, 1
        %s190 = sand.u32 %s39, 1
        %s191 = scalar_lea.sflag [#allocation5], %s190
        %s192 = sand.u32 %s39, 1
        %s193 = smul.addr %s192, 8
        %s194 = scalar_lea.vmem [#allocation4], %s193
        // Predicated region
        $region33: #{tpu_custom_call.1} parent=31 // pred_check
          %p195 = pneg %p52
        $region34: #{tpu_custom_call.1} parent=31 // pred_check_branch
          %197 = sbr.rel (%p195) target = $region36
        $region35: #{tpu_custom_call.1} parent=31 // pred_region
          %198 = dma.done %s191, 128
        $region36: #{tpu_custom_call.1} parent=31 // pred_fallthru
          _
        %s199 = sand.u32 %s39, 1
        %s200 = scalar_lea.sflag [#allocation5], %s199
        %s201 = sand.u32 %s39, 1
        %s202 = smul.addr %s201, 8
        %s203 = scalar_lea.vmem [#allocation4], %s202
        %p204 = pneg %p52
        %p205 = pneg %p49
        %p206 = scmp.lt.s32.totalorder %s21, 1
        %s207 = scalar_select %p206, %s21, 1
        %s208 = smul.addr %s207, 8
        %s209 = scalar_lea.vmem %s1, %s208
        %p210 = pneg %p78
        %p211 = pneg %p75
        %p212 = scmp.lt.s32.totalorder %s21, 1
        %s213 = scalar_select %p212, %s21, 1
        %s214 = smul.addr %s213, 8
        %s215 = scalar_lea.vmem %s2, %s214
        %p216 = pneg %p104
        %p217 = pneg %p101
        %p218 = pneg %p130
        %p219 = pneg %p127
        %p220 = scmp.lt.s32.totalorder %s21, 1
        %s221 = scalar_select %p220, %s21, 1
        %s222 = smul.addr %s221, 8
        %s223 = scalar_lea.vmem %s3, %s222
        %p224 = scmp.lt.s32.totalorder %s21, 1
        %s225 = scalar_select %p224, %s21, 1
        %s226 = smul.addr %s225, 8
        %s227 = scalar_lea.vmem %s1, %s226
        %p228 = scmp.lt.s32.totalorder %s21, 1
        %s229 = scalar_select %p228, %s21, 1
        %s230 = smul.addr %s229, 8
        %s231 = scalar_lea.vmem %s2, %s230
        %p232 = scmp.lt.s32.totalorder %s21, 1
        %s233 = scalar_select %p232, %s21, 1
        %s234 = smul.addr %s233, 8
        %s235 = scalar_lea.vmem %s3, %s234
        %p236 = scmp.eq.s32.totalorder %s22, 0
        // Predicated region
        $region37: #{tpu_custom_call.1} parent=31 // pred_check
          %p237 = pneg %p236
        $region38: #{tpu_custom_call.1} parent=31 // pred_check_branch
          %239 = sbr.rel (%p237) target = $region40
        $region39: #{tpu_custom_call.1} parent=31 // pred_region
          %vm240 = vcmask 7168
          %241 = vst.msk [vmem:[#allocation2] sm:$0xff] %vm240, -inf
          %242 = vst.msk [vmem:[#allocation3] sm:$0xff] %vm240, 0.0
        $region40: #{tpu_custom_call.1} parent=31 // pred_fallthru
          _
        %v243 = vld [vmem:[%s194] sm:$0xff]
        %v244 = vlaneseq
        %v245 = vand.u32 %v244, 127
        %v246 = vld [vmem:[%s227] sm:$0xff]
        %s247 = smul.u32 %s22, 128
        %v248 = vstv %s247
        %v249 = vsub.s32 %v246, %v248
        %250 = vset.pattern.permute.xlu0 0
        %251 = vperm.xlu0 %250, %v249
        %v252 = vpop.permute.xlu0 %251
        %vm253 = vcmp.eq.s32.totalorder %v245, %v252
        %v254 = vmul.f32 %v243, 32.0
        %v255 = vsub.f32 %v254, 16.0
        %v256 = vsel %vm253, %v255, %v254
        %s257 = ssub.s32 300, %s247
        %v258 = vstv %s257
        %vm259 = vcmp.lt.s32.totalorder %v245, %v258
        %v260 = vsel %vm259, %v256, -1e+30
        %261 = vmax.xlane.f32.xlu0 %v260
        %v262 = vpop.xlane.xlu0 %261
        %v263 = vld [vmem:[#allocation2] sm:$0xff]
        %v264 = vmax.f32 %v263, %v262
        %v265 = vsub.f32 %v263, %v264
        %v266 = vmul.f32 %v265, 1.442695
        %v267 = vpow.pop %v266
        %269 = vset.pattern.permute.xlu0 0
        %270 = vperm.xlu0 %269, %v264
        %v271 = vpop.permute.xlu0 %270
        %v273 = vsub.f32 %v260, %v271
        %v274 = vmul.f32 %v273, 1.442695
        %v275 = vpow.pop %v274
        %v276 = vld [vmem:[#allocation3] sm:$0xff]
        %v277 = vmul.f32 %v267, %v276
        %278 = vadd.xlane.f32.xlu0 %v275
        %v279 = vpop.xlane.xlu0 %278
        %v280 = vadd.f32 %v277, %v279
        %vm281 = vcmask 7168
        %282 = vst.msk [vmem:[#allocation3] sm:$0xff] %vm281, %v280
        %283 = vst.msk [vmem:[#allocation2] sm:$0xff] %vm281, %v264
        %p284 = scmp.eq.s32.totalorder %s22, 2
        // Predicated region
        $region41: #{tpu_custom_call.1} parent=31 // pred_check
          %p285 = pneg %p284
        $region42: #{tpu_custom_call.1} parent=31 // pred_check_branch
          %287 = sbr.rel (%p285) target = $region44
        $region43: #{tpu_custom_call.1} parent=31 // pred_region
          %v288 = vld [vmem:[#allocation2] sm:$0xff]
          %v289 = vld [vmem:[#allocation3] sm:$0xff]
          %v290 = vlog2.pop %v289
          %v291 = vmul.f32 %v290, 0.6931472
          %v292 = vadd.f32 %v288, %v291
          %v293 = vld [vmem:[%s231] sm:$0xff]
          %v294 = vmul.f32 %v293, 32.0
          %v295 = vsub.f32 %v294, 16.0
          %v296 = vsub.f32 %v292, %v295
          %297 = vst.msk [vmem:[%s235] sm:$0xff] %vm281, %v296
        $region44: #{tpu_custom_call.1} parent=31 // pred_fallthru
          _
        %p298 = scmp.lt.s32.totalorder %s21, 1
        %s299 = scalar_select %p298, %s21, 1
        %s300 = smul.addr %s299, 8
        %s301 = scalar_lea.vmem %s3, %s300
        // Predicated region
        $region45: #{tpu_custom_call.1} parent=31 // pred_check
          %p302 = pneg %p127
        $region46: #{tpu_custom_call.1} parent=31 // pred_check_branch
          %304 = sbr.rel (%p302) target = $region48
        $region47: #{tpu_custom_call.1} parent=31 // pred_region
          _
        $region48: #{tpu_custom_call.1} parent=31 // pred_fallthru
          _
      $region32: #{tpu_custom_call.1} parent=5 // pred_fallthru
        _
      %p305 = scmp.le.s32.totalorder 2, %s12
      // Predicated region
      $region49: #{tpu_custom_call.1} parent=5 // pred_check
        %p306 = pneg %p305
      $region50: #{tpu_custom_call.1} parent=5 // pred_check_branch
        %308 = sbr.rel (%p306) target = $region52
      $region51: #{tpu_custom_call.1} parent=5 // pred_region
        %s309 = ssub.s32 %s12, 2
        // Predicated region
        $region53: #{tpu_custom_call.1} parent=51 // pred_check
          %p310 = pneg %p133
        $region54: #{tpu_custom_call.1} parent=51 // pred_check_branch
          %312 = sbr.rel (%p310) target = $region56
        $region55: #{tpu_custom_call.1} parent=51 // pred_region
          %p313 = scmp.lt.s32.totalorder %s23, 1
          %s314 = scalar_select %p313, %s23, 1
          %s315 = smul.addr %s314, 8
          %s316 = scalar_lea.vmem %s3, %s315
        $region56: #{tpu_custom_call.1} parent=51 // pred_fallthru
          _
      $region52: #{tpu_custom_call.1} parent=5 // pred_fallthru
        _
    $region6: #{tpu_custom_call.1} parent=1 // loop_footer
      %s16 = sadd.s32 1, %s12
    $region7: #{tpu_custom_call.1} parent=1 // loop_footer_branch
      %11 = sbr.rel target = $region3
    $region8: #{tpu_custom_call.1} parent=1 // loop_exit
      _
    %317 = vsyncpa [#allocation5], 1
    %s318 = scalar_lea.sflag [#allocation5], 1
    %319 = vsyncpa %s318, 1

</llo_original>
